<compile_context>
chip_gen: v5e
topology: v5e:2x2
jax: 0.10.0
libtpu: 0.0.40
codegen_flags: <defaults>
</compile_context>

<pallas_src>
import jax
import jax.numpy as jnp
from jax.experimental import pallas as pl
from jax.experimental.pallas import tpu as pltpu

EPS = 1e-6

# Double-buffered input budget for one block: 2 * nb * tc * HW * itemsize.
_BLOCK_BUDGET_BYTES = 16 * 1024 * 1024
# Explicit scoped-VMEM limit: safe on v5e/v6e (128 MiB phys) and v7x (64 MiB).
_VMEM_LIMIT_BYTES = 32 * 1024 * 1024


def gem_kernel(p_ref, x_ref, o_ref):
    # p_ref : SMEM f32[1]          learnable GeM exponent (scalar-prefetched)
    # x_ref : VMEM [nb, tc, HW]    native-layout slab (channels x spatial)
    # o_ref : VMEM [nb, 1, tc]     pooled result, channels lane-dense
    p = p_ref[0]
    inv_p = 1.0 / p
    hw = x_ref.shape[-1]

    x = x_ref[...].astype(jnp.float32)
    # Relayout: channels onto the lane (fast) axis.  For the canonical GeM
    # shape (C=2048, HW=49) this keeps vregs ~0.9 dense instead of 49/128,
    # which directly scales the EUP (transcendental) work below.  XLU slot.
    xt = jnp.transpose(x, (0, 2, 1))                      # (nb, HW, tc)
    xc = jnp.maximum(xt, EPS)                             # clamp(min=eps)  VPU
    e = jnp.exp(p * jnp.log(xc))                          # x ** p          EUP
    m = jnp.sum(e, axis=1, keepdims=True) * (1.0 / hw)    # (nb, 1, tc) mean/HW
    o_ref[...] = jnp.exp(jnp.log(m) * inv_p).astype(o_ref.dtype)   # mean**(1/p)


def _choose_tiling(N, C, HW, itemsize, budget_bytes=_BLOCK_BUDGET_BYTES):
    """Pick (nb, tc): batch-fold and channel-tile sizes.

    tc is the full channel axis when the double-buffered block fits the
    budget, else the largest lane/sublane-friendly divisor of C that fits
    (the fallback never exceeds the budget).  nb folds batch rows into one
    block to amortize the ~0.35 us per-grid-step overhead, while keeping the
    grid at >= 2 steps so both v7x TensorCores get work.
    """
    def fits(nb, tc):
        return 2 * nb * tc * HW * itemsize <= budget_bytes

    if fits(1, C):
        tc = C
    else:
        divs = [d for d in range(1, C) if C % d == 0 and fits(1, d)]
        tc = (max([d for d in divs if d % 128 == 0], default=0)    # lane-dense
              or max([d for d in divs if d % 8 == 0], default=0)   # sublane-ok
              or max(divs, default=1))                             # last resort

    nb = 1
    if tc == C:
        for cand in (8, 4, 2):
            if N % cand == 0 and N // cand >= 2 and fits(cand, tc):
                nb = cand
                break
    return nb, tc


def gem_pool(x, p):
    """GeM pooling.  x: (N, C, H, W) native layout (any float dtype),
    p: (1,) f32  ->  (N, C) in x.dtype."""
    N, C, H, W = x.shape
    HW = H * W
    x3 = x.reshape(N, C, HW)                      # contiguous: free metadata reshape
    itemsize = jnp.dtype(x.dtype).itemsize
    nb, tc = _choose_tiling(N, C, HW, itemsize)
    grid = (N // nb, C // tc)

    cost = pl.CostEstimate(
        flops=4 * N * C * HW + 4 * N * C,             # clamp/mul/sum + epilogue
        transcendentals=2 * N * C * HW + 2 * N * C,   # log+exp per elem & per output
        bytes_accessed=N * C * HW * itemsize + N * C * itemsize + 4,
    )

    out = pl.pallas_call(
        gem_kernel,
        out_shape=jax.ShapeDtypeStruct((N, 1, C), x.dtype),
        grid_spec=pltpu.PrefetchScalarGridSpec(
            num_scalar_prefetch=1,                    # p lands in SMEM
            grid=grid,
            in_specs=[
                # native NCHW block: (nb, tc, HW) is contiguous in HBM
                pl.BlockSpec((nb, tc, HW), lambda n, c, p_ref: (n, c, 0)),
            ],
            # lane-dense output block (nb, 1, tc)
            out_specs=pl.BlockSpec((nb, 1, tc), lambda n, c, p_ref: (n, 0, c)),
        ),
        compiler_params=pltpu.CompilerParams(
            dimension_semantics=("parallel", "parallel"),
            vmem_limit_bytes=_VMEM_LIMIT_BYTES),
        cost_estimate=cost,
    )(p, x3)
    return out.reshape(N, C)


def gem_reference(x, p):
    """Pure-JAX reference matching the PyTorch forward exactly."""
    xc = jnp.maximum(x, EPS)                      # clamp(min=eps)
    xp = xc ** p[0]
    m = jnp.mean(xp, axis=(-2, -1))               # avg_pool2d over full spatial extent
    return m ** (1.0 / p[0])                      # (N, C)  (Flatten(1) is implicit)


if __name__ == "__main__":
    # Deterministic parameter init (module __init__: p = ones(1) * 3).
    p_param = jnp.ones((1,), dtype=jnp.float32) * 3.0

    key = jax.random.PRNGKey(0)
    x = jax.random.normal(key, (2, 4, 16, 16), dtype=jnp.float32)

    y = gem_pool(x, p_param)
    y = jax.block_until_ready(y)

    y_ref = gem_reference(x, p_param)
    assert y.shape == (2, 4), y.shape
    assert jnp.allclose(y, y_ref, atol=1e-5, rtol=1e-5), (y, y_ref)

    print("KERNEL_OK")
</pallas_src>

<mosaic_0001>
module attributes {stable_mosaic.version = 11 : i64} {
  func.func @gem_kernel(%arg0: i32, %arg1: i32, %arg2: memref<1xf32, #tpu.memory_space<smem>>, %arg3: memref<1x4x256xf32, #tpu.memory_space<vmem>>, %arg4: memref<1x1x4xf32, #tpu.memory_space<vmem>>) attributes {dimension_semantics = [#tpu.dimension_semantics<parallel>, #tpu.dimension_semantics<parallel>], iteration_bounds = array<i64: 2, 1>, scalar_prefetch = 1 : i64, scratch_operands = 0 : i64, tpu.core_type = #tpu.core_type<tc>, window_params = [{transform_indices = @transform_0, window_bounds = array<i64: 1, 4, 256>}, {transform_indices = @transform_1, window_bounds = array<i64: 1, 1, 4>}]} {
    %c0 = arith.constant 0 : index
    %0 = memref.load %arg2[%c0] : memref<1xf32, #tpu.memory_space<smem>>
    %cst = arith.constant 1.000000e+00 : f32
    %1 = arith.divf %cst, %0 : f32
    %c0_0 = arith.constant 0 : index
    %c0_1 = arith.constant 0 : index
    %c0_2 = arith.constant 0 : index
    %2 = vector.load %arg3[%c0_0, %c0_1, %c0_2] : memref<1x4x256xf32, #tpu.memory_space<vmem>>, vector<1x4x256xf32>
    %3 = tpu.transpose %2, [0, 2, 1] : vector<1x4x256xf32> -> vector<1x256x4xf32>
    %cst_3 = arith.constant 9.99999997E-7 : f32
    %4 = vector.broadcast %cst_3 : f32 to vector<1x256x4xf32>
    %5 = arith.maximumf %3, %4 : vector<1x256x4xf32>
    %6 = math.log %5 : vector<1x256x4xf32>
    %7 = vector.broadcast %0 : f32 to vector<1x256x4xf32>
    %8 = arith.mulf %7, %6 : vector<1x256x4xf32>
    %9 = math.exp %8 : vector<1x256x4xf32>
    %cst_4 = arith.constant dense<0.000000e+00> : vector<1x4xf32>
    %10 = vector.multi_reduction <add>, %9, %cst_4 [1] : vector<1x256x4xf32> to vector<1x4xf32>
    %11 = vector.shape_cast %10 : vector<1x4xf32> to vector<1x1x4xf32>
    %cst_5 = arith.constant 3.906250e-03 : f32
    %12 = vector.broadcast %cst_5 : f32 to vector<1x1x4xf32>
    %13 = arith.mulf %11, %12 : vector<1x1x4xf32>
    %14 = math.log %13 : vector<1x1x4xf32>
    %15 = vector.broadcast %1 : f32 to vector<1x1x4xf32>
    %16 = arith.mulf %14, %15 : vector<1x1x4xf32>
    %17 = math.exp %16 : vector<1x1x4xf32>
    %c0_6 = arith.constant 0 : index
    %c0_7 = arith.constant 0 : index
    %c0_8 = arith.constant 0 : index
    %18 = vector.load %arg4[%c0_6, %c0_7, %c0_8] : memref<1x1x4xf32, #tpu.memory_space<vmem>>, vector<1x1x4xf32>
    tpu.vector_store %arg4[%c0_6, %c0_7, %c0_8], %17 {strides = array<i32>} : memref<1x1x4xf32, #tpu.memory_space<vmem>>, vector<1x1x4xf32>,
    return
  }
  func.func @transform_0(%arg0: i32, %arg1: i32, %arg2: memref<1xf32, #tpu.memory_space<smem>>) -> (i32, i32, i32) {
    %c0_i32 = arith.constant 0 : i32
    %c0_i32_0 = arith.constant 0 : i32
    return %arg0, %arg1, %c0_i32 : i32, i32, i32
  }
  func.func @transform_1(%arg0: i32, %arg1: i32, %arg2: memref<1xf32, #tpu.memory_space<smem>>) -> (i32, i32, i32) {
    %c0_i32 = arith.constant 0 : i32
    %c0_i32_0 = arith.constant 0 : i32
    return %arg0, %c0_i32, %arg1 : i32, i32, i32
  }
}

</mosaic_0001>

<llo_original>
// kernel: tpu_custom_call.1
$region0: #{tpu_custom_call.1}
  #allocation0 [shape = 'u32[]', space=smem, size = 0x4, offset = 0x4, fixed_abs, tag = 'smem constant byte address 0x4 - core index']
  #allocation1 [shape = 'u32[72,128]{1,0:T(1,128)}', space=vmem, size = 0x9000, scoped, tag = 'internal scratch']
  #allocation2 [shape = 's32[1]{0}', space=sflag, size = 0x4, scoped, tag = 'scoped memory for tpu_custom_call.1']
  #allocation3 [shape = 'f32[1]{0:T(128)S(6)}', space=smem, size = 0x200, scoped, tag = 'prefetched SMEM operand 0']
  %s0 = inlined_call_operand.<no memory space> [shape: f32[1], index: 0, kind: input, shape index: {}]
  %s1 = inlined_call_operand.hbm [shape: f32[2,4,256], index: 1, kind: input, shape index: {}]
  %s2 = inlined_call_operand.hbm [shape: f32[2,1,4], index: 2, kind: output, shape index: {}]
  %s3 = sld [smem:[#allocation0]]
  $region41: #{tpu_custom_call.1} parent=0
    _
  %s5 = ssub.s32 1, %s3
  %s6 = scalar_select 0, %s5, %s3
  %7 = sst [smem:[#allocation3]] %s0
  $region1: #{tpu_custom_call.1} parent=0
    #allocation4 [shape = 'u8[8192]{0}', space=vmem, size = 0x2000, scoped, tag = 'input window, operand 1']
    #allocation5 [shape = 's32[2]{0}', space=sflag, size = 0x8, scoped, tag = 'scoped memory for tpu_custom_call.1']
    #allocation6 [shape = 's32[2]{0}', space=sflag, size = 0x8, scoped, tag = 'scoped memory for tpu_custom_call.1']
    #allocation7 [shape = 'u8[1024]{0}', space=vmem, size = 0x400, scoped, tag = 'output window, operand 0']
    %8 = vsyncpa [#allocation5], 0
    %s9 = scalar_lea.sflag [#allocation5], 1
    %10 = vsyncpa %s9, 0
    %11 = vsyncpa [#allocation6], 0
    %s12 = scalar_lea.sflag [#allocation6], 1
    %13 = vsyncpa %s12, 0
    loop: start=0, step=1, limit=4
    $region2: #{tpu_custom_call.1} parent=1 // loop_pre_header
      _
    $region3: #{tpu_custom_call.1} parent=1 // loop_header
      %s15 = sphi 0, %s19
      %p16 = scmp.ge.s32.totalorder %s15, 4
      %s22 = sphi 0, %s34
      %s23 = sphi 0, %s30
      %s24 = sphi 0, %s22
      %s25 = sphi 0, %s23
      %s26 = sphi 0, %s24
      %s27 = sphi 0, %s25
      %s39 = sphi 0, %s41
      %s42 = sphi 0, %s39
      %s43 = sphi 0, %s42
      %s59 = sphi 0, %s43
      %s67 = sphi 0, %s69
      %s70 = sphi 0, %s67
      %s71 = sphi 0, %s70
      %s87 = sphi 0, %s71
    $region4: #{tpu_custom_call.1} parent=1 // loop_header_branch
      %18 = sbr.rel (%p16) target = $region8
    $region5: #{tpu_custom_call.1} parent=1 // loop_body
      %s20 = ssub.s32 %s15, 1
      %s21 = ssub.s32 %s15, 2
      %s28 = sadd.s32 1, %s23
      %p29 = scmp.ge.s32.totalorder %s28, 1
      %s30 = scalar_select %p29, 0, %s28
      %s31 = sadd.s32 1, %s22
      %s32 = scalar_select %p29, %s31, %s22
      %p33 = scmp.ge.s32.totalorder %s32, 2
      %s34 = scalar_select %p33, 0, %s32
      %s35 = ssub.s32 %s22, %s34
      %s36 = ssub.s32 %s23, %s30
      %s37 = sor.u32 %s35, %s36
      %p38 = scmp.eq.s32.totalorder %s37, 0
      %s40 = sadd.s32 %s39, 1
      %s41 = scalar_select %p38, %s39, %s40
      %p44 = pneg %p38
      %p45 = scmp.eq.s32.totalorder %s15, 1
      %p46 = por %p44, %p45
      %p47 = scmp.ne.s32.totalorder %s39, %s42
      %p48 = scmp.eq.s32.totalorder %s15, 0
      %p49 = por %p47, %p48
      %p50 = scmp.ne.s32.totalorder %s39, %s42
      %p51 = scmp.eq.s32.totalorder %s20, 1
      %p52 = por %p50, %p51
      %p53 = scmp.ne.s32.totalorder %s42, %s43
      %p54 = scmp.eq.s32.totalorder %s20, 0
      %p55 = por %p53, %p54
      %p56 = scmp.ne.s32.totalorder %s42, %s43
      %p57 = scmp.eq.s32.totalorder %s21, 1
      %p58 = por %p56, %p57
      %p60 = scmp.ne.s32.totalorder %s43, %s59
      %p61 = scmp.eq.s32.totalorder %s21, 0
      %p62 = por %p60, %p61
      %s63 = ssub.s32 %s22, %s34
      %s64 = ssub.s32 %s23, %s30
      %s65 = sor.u32 %s63, %s64
      %p66 = scmp.eq.s32.totalorder %s65, 0
      %s68 = sadd.s32 %s67, 1
      %s69 = scalar_select %p66, %s67, %s68
      %p72 = pneg %p66
      %p73 = scmp.eq.s32.totalorder %s15, 1
      %p74 = por %p72, %p73
      %p75 = scmp.ne.s32.totalorder %s67, %s70
      %p76 = scmp.eq.s32.totalorder %s15, 0
      %p77 = por %p75, %p76
      %p78 = scmp.ne.s32.totalorder %s67, %s70
      %p79 = scmp.eq.s32.totalorder %s20, 1
      %p80 = por %p78, %p79
      %p81 = scmp.ne.s32.totalorder %s70, %s71
      %p82 = scmp.eq.s32.totalorder %s20, 0
      %p83 = por %p81, %p82
      %p84 = scmp.ne.s32.totalorder %s70, %s71
      %p85 = scmp.eq.s32.totalorder %s21, 1
      %p86 = por %p84, %p85
      %p88 = scmp.ne.s32.totalorder %s71, %s87
      %p89 = scmp.eq.s32.totalorder %s21, 0
      %p90 = por %p88, %p89
      %p91 = scmp.le.s32.totalorder 1, %s15
      %p92 = scmp.lt.s32.totalorder %s15, 3
      %p93 = pnand %p91, %p92
      %p94 = pneg %p93
      // Predicated region
      $region9: #{tpu_custom_call.1} parent=5 // pred_check
        _
      $region10: #{tpu_custom_call.1} parent=5 // pred_check_branch
        %96 = sbr.rel (%p93) target = $region12
      $region11: #{tpu_custom_call.1} parent=5 // pred_region
        %s97 = ssub.s32 %s15, 1
      $region12: #{tpu_custom_call.1} parent=5 // pred_fallthru
        _
      %p98 = scmp.lt.s32.totalorder %s15, 2
      // Predicated region
      $region13: #{tpu_custom_call.1} parent=5 // pred_check
        %p99 = pneg %p98
      $region14: #{tpu_custom_call.1} parent=5 // pred_check_branch
        %101 = sbr.rel (%p99) target = $region16
      $region15: #{tpu_custom_call.1} parent=5 // pred_region
        // Predicated region
        $region17: #{tpu_custom_call.1} parent=15 // pred_check
          %p102 = pneg %p49
        $region18: #{tpu_custom_call.1} parent=15 // pred_check_branch
          %104 = sbr.rel (%p102) target = $region20
        $region19: #{tpu_custom_call.1} parent=15 // pred_region
          %s105 = sand.u32 %s39, 1
          %s106 = scalar_lea.sflag [#allocation5], %s105
          %s107 = sand.u32 %s39, 1
          %s108 = smul.addr %s107, 8
          %s109 = scalar_lea.vmem [#allocation4], %s108
          %111 = vsyncadd %s106, 0
          %s112 = smul.addr %s23, 2
          %s113 = smul.addr %s22, 2
          %s114 = sadd.s32 %s112, %s113
          %s115 = smul.addr %s114, 4
          %s116 = scalar_lea.hbm %s1, %s115
          %s118 = sshll.u32 %s116, 4
          %s119 = int_to_ptr.hbm [resolvable:$true] %s118
          %s120 = sshll.u32 %s109, 4
          %s121 = int_to_ptr.vmem [resolvable:$true] %s120
          %123 = dma.hbm_to_vmem [thread:$0]  %s119, 128, %s121, %s106
        $region20: #{tpu_custom_call.1} parent=15 // pred_fallthru
          _
      $region16: #{tpu_custom_call.1} parent=5 // pred_fallthru
        _
      %p124 = scmp.le.s32.totalorder 1, %s15
      %p125 = scmp.lt.s32.totalorder %s15, 3
      %p126 = pnand %p124, %p125
      %p127 = pneg %p126
      // Predicated region
      $region21: #{tpu_custom_call.1} parent=5 // pred_check
        _
      $region22: #{tpu_custom_call.1} parent=5 // pred_check_branch
        %129 = sbr.rel (%p126) target = $region24
      $region23: #{tpu_custom_call.1} parent=5 // pred_region
        %s130 = ssub.s32 %s15, 1
        %s131 = sand.u32 %s42, 1
        %s132 = scalar_lea.sflag [#allocation5], %s131
        %s133 = sand.u32 %s42, 1
        %s134 = smul.addr %s133, 8
        %s135 = scalar_lea.vmem [#allocation4], %s134
        // Predicated region
        $region25: #{tpu_custom_call.1} parent=23 // pred_check
          %p136 = pneg %p55
        $region26: #{tpu_custom_call.1} parent=23 // pred_check_branch
          %138 = sbr.rel (%p136) target = $region28
        $region27: #{tpu_custom_call.1} parent=23 // pred_region
          %140 = dma.done %s132, 128
        $region28: #{tpu_custom_call.1} parent=23 // pred_fallthru
          _
        %s141 = sand.u32 %s42, 1
        %s142 = scalar_lea.sflag [#allocation5], %s141
        %s143 = sand.u32 %s42, 1
        %s144 = smul.addr %s143, 8
        %s145 = scalar_lea.vmem [#allocation4], %s144
        %p146 = pneg %p55
        %p147 = pneg %p52
        %p148 = pneg %p83
        %p149 = pneg %p80
        %s150 = sand.u32 %s70, 1
        %s151 = scalar_lea.sflag [#allocation6], %s150
        %s152 = sand.u32 %s70, 1
        %s153 = scalar_lea.vmem [#allocation7], %s152
        %s154 = sld [smem:[#allocation3]]
        %v155 = vstv %s154
        %v156 = vrcp.pop %v155
        %v157 = vmul.f32 %v155, %v156
        %v158 = vsub.f32 1.0, %v157
        %v159 = vmul.f32 %v156, %v158
        %v160 = vadd.f32 %v156, %v159
        %vm161 = vweird.f32 %v155
        %vm162 = vweird.f32 %v156
        %vm163 = vmor %vm161, %vm162
        %v164 = vsel %vm163, %v156, %v160
        %v165 = vand.u32 2147483647, %v155
        %vm166 = vcmp.eq.f32.partialorder %v165, 8.507059e+37
        %v167 = vand.u32 %v155, 2147483648
        %v168 = vor.u32 1.1754944e-38, %v167
        %v169 = vsel %vm166, %v168, %v164
        %s170 = vtos %v169
        %v171 = vld [vmem:[%s135] sm:$0xff]
        %173 = vst [vmem:[#allocation1] ss:$2 sm:$0xff] %v171
        %v174 = vld.sshfl [vmem:[#allocation1] sm:$0xff pattern:$0x75316420]
        %v175 = vld.sshfl [vmem:[#allocation1 + $0x8] sm:$0xff pattern:$0x75316420]
        %178 = vxpose.xlu0.b32.start [1/16] %v174, 128
        %179 = vxpose.xlu0.b32.cont [2/16] 0.0, 128
        %180 = vxpose.xlu0.b32.cont [3/16] 0.0, 128
        %181 = vxpose.xlu0.b32.cont [4/16] 0.0, 128
        %182 = vxpose.xlu0.b32.cont [5/16] 0.0, 128
        %183 = vxpose.xlu0.b32.cont [6/16] 0.0, 128
        %184 = vxpose.xlu0.b32.cont [7/16] 0.0, 128
        %185 = vxpose.xlu0.b32.cont [8/16] 0.0, 128
        %186 = vxpose.xlu0.b32.cont [9/16] 0.0, 128
        %187 = vxpose.xlu0.b32.cont [10/16] 0.0, 128
        %188 = vxpose.xlu0.b32.cont [11/16] 0.0, 128
        %189 = vxpose.xlu0.b32.cont [12/16] 0.0, 128
        %190 = vxpose.xlu0.b32.cont [13/16] 0.0, 128
        %191 = vxpose.xlu0.b32.cont [14/16] 0.0, 128
        %192 = vxpose.xlu0.b32.cont [15/16] 0.0, 128
        %193 = vxpose.xlu0.b32.end [16/16] 0.0, 128
        %v194 = vpop.trf.xlu0
        %v195 = vpop.trf.xlu0
        %v196 = vpop.trf.xlu0
        %v197 = vpop.trf.xlu0
        %v198 = vpop.trf.xlu0
        %v199 = vpop.trf.xlu0
        %v200 = vpop.trf.xlu0
        %v201 = vpop.trf.xlu0
        %v202 = vpop.trf.xlu0
        %v203 = vpop.trf.xlu0
        %v204 = vpop.trf.xlu0
        %v205 = vpop.trf.xlu0
        %v206 = vpop.trf.xlu0
        %v207 = vpop.trf.xlu0
        %v208 = vpop.trf.xlu0
        %v209 = vpop.trf.xlu0
        %210 = vxpose.xlu0.b32.start [1/16] %v175, 128
        %211 = vxpose.xlu0.b32.cont [2/16] 0.0, 128
        %212 = vxpose.xlu0.b32.cont [3/16] 0.0, 128
        %213 = vxpose.xlu0.b32.cont [4/16] 0.0, 128
        %214 = vxpose.xlu0.b32.cont [5/16] 0.0, 128
        %215 = vxpose.xlu0.b32.cont [6/16] 0.0, 128
        %216 = vxpose.xlu0.b32.cont [7/16] 0.0, 128
        %217 = vxpose.xlu0.b32.cont [8/16] 0.0, 128
        %218 = vxpose.xlu0.b32.cont [9/16] 0.0, 128
        %219 = vxpose.xlu0.b32.cont [10/16] 0.0, 128
        %220 = vxpose.xlu0.b32.cont [11/16] 0.0, 128
        %221 = vxpose.xlu0.b32.cont [12/16] 0.0, 128
        %222 = vxpose.xlu0.b32.cont [13/16] 0.0, 128
        %223 = vxpose.xlu0.b32.cont [14/16] 0.0, 128
        %224 = vxpose.xlu0.b32.cont [15/16] 0.0, 128
        %225 = vxpose.xlu0.b32.end [16/16] 0.0, 128
        %v226 = vpop.trf.xlu0
        %v227 = vpop.trf.xlu0
        %v228 = vpop.trf.xlu0
        %v229 = vpop.trf.xlu0
        %v230 = vpop.trf.xlu0
        %v231 = vpop.trf.xlu0
        %v232 = vpop.trf.xlu0
        %v233 = vpop.trf.xlu0
        %v234 = vpop.trf.xlu0
        %v235 = vpop.trf.xlu0
        %v236 = vpop.trf.xlu0
        %v237 = vpop.trf.xlu0
        %v238 = vpop.trf.xlu0
        %v239 = vpop.trf.xlu0
        %v240 = vpop.trf.xlu0
        %v241 = vpop.trf.xlu0
        %v242 = vmax.f32 %v194, 1e-06
        %v243 = vmax.f32 %v195, 1e-06
        %v244 = vmax.f32 %v196, 1e-06
        %v245 = vmax.f32 %v197, 1e-06
        %v246 = vmax.f32 %v198, 1e-06
        %v247 = vmax.f32 %v199, 1e-06
        %v248 = vmax.f32 %v200, 1e-06
        %v249 = vmax.f32 %v201, 1e-06
        %v250 = vmax.f32 %v202, 1e-06
        %v251 = vmax.f32 %v203, 1e-06
        %v252 = vmax.f32 %v204, 1e-06
        %v253 = vmax.f32 %v205, 1e-06
        %v254 = vmax.f32 %v206, 1e-06
        %v255 = vmax.f32 %v207, 1e-06
        %v256 = vmax.f32 %v208, 1e-06
        %v257 = vmax.f32 %v209, 1e-06
        %v258 = vmax.f32 %v226, 1e-06
        %v259 = vmax.f32 %v227, 1e-06
        %v260 = vmax.f32 %v228, 1e-06
        %v261 = vmax.f32 %v229, 1e-06
        %v262 = vmax.f32 %v230, 1e-06
        %v263 = vmax.f32 %v231, 1e-06
        %v264 = vmax.f32 %v232, 1e-06
        %v265 = vmax.f32 %v233, 1e-06
        %v266 = vmax.f32 %v234, 1e-06
        %v267 = vmax.f32 %v235, 1e-06
        %v268 = vmax.f32 %v236, 1e-06
        %v269 = vmax.f32 %v237, 1e-06
        %v270 = vmax.f32 %v238, 1e-06
        %v271 = vmax.f32 %v239, 1e-06
        %v272 = vmax.f32 %v240, 1e-06
        %v273 = vmax.f32 %v241, 1e-06
        %v274 = vlog2.pop %v242
        %v275 = vmul.f32 %v274, 0.6931472
        %v276 = vlog2.pop %v243
        %v277 = vmul.f32 %v276, 0.6931472
        %v278 = vlog2.pop %v244
        %v279 = vmul.f32 %v278, 0.6931472
        %v280 = vlog2.pop %v245
        %v281 = vmul.f32 %v280, 0.6931472
        %v282 = vlog2.pop %v246
        %v283 = vmul.f32 %v282, 0.6931472
        %v284 = vlog2.pop %v247
        %v285 = vmul.f32 %v284, 0.6931472
        %v286 = vlog2.pop %v248
        %v287 = vmul.f32 %v286, 0.6931472
        %v288 = vlog2.pop %v249
        %v289 = vmul.f32 %v288, 0.6931472
        %v290 = vlog2.pop %v250
        %v291 = vmul.f32 %v290, 0.6931472
        %v292 = vlog2.pop %v251
        %v293 = vmul.f32 %v292, 0.6931472
        %v294 = vlog2.pop %v252
        %v295 = vmul.f32 %v294, 0.6931472
        %v296 = vlog2.pop %v253
        %v297 = vmul.f32 %v296, 0.6931472
        %v298 = vlog2.pop %v254
        %v299 = vmul.f32 %v298, 0.6931472
        %v300 = vlog2.pop %v255
        %v301 = vmul.f32 %v300, 0.6931472
        %v302 = vlog2.pop %v256
        %v303 = vmul.f32 %v302, 0.6931472
        %v304 = vlog2.pop %v257
        %v305 = vmul.f32 %v304, 0.6931472
        %v306 = vlog2.pop %v258
        %v307 = vmul.f32 %v306, 0.6931472
        %v308 = vlog2.pop %v259
        %v309 = vmul.f32 %v308, 0.6931472
        %v310 = vlog2.pop %v260
        %v311 = vmul.f32 %v310, 0.6931472
        %v312 = vlog2.pop %v261
        %v313 = vmul.f32 %v312, 0.6931472
        %v314 = vlog2.pop %v262
        %v315 = vmul.f32 %v314, 0.6931472
        %v316 = vlog2.pop %v263
        %v317 = vmul.f32 %v316, 0.6931472
        %v318 = vlog2.pop %v264
        %v319 = vmul.f32 %v318, 0.6931472
        %v320 = vlog2.pop %v265
        %v321 = vmul.f32 %v320, 0.6931472
        %v322 = vlog2.pop %v266
        %v323 = vmul.f32 %v322, 0.6931472
        %v324 = vlog2.pop %v267
        %v325 = vmul.f32 %v324, 0.6931472
        %v326 = vlog2.pop %v268
        %v327 = vmul.f32 %v326, 0.6931472
        %v328 = vlog2.pop %v269
        %v329 = vmul.f32 %v328, 0.6931472
        %v330 = vlog2.pop %v270
        %v331 = vmul.f32 %v330, 0.6931472
        %v332 = vlog2.pop %v271
        %v333 = vmul.f32 %v332, 0.6931472
        %v334 = vlog2.pop %v272
        %v335 = vmul.f32 %v334, 0.6931472
        %v336 = vlog2.pop %v273
        %v337 = vmul.f32 %v336, 0.6931472
        %v338 = vstv %s154
        %v339 = vmul.f32 %v338, %v275
        %v340 = vmul.f32 %v338, %v277
        %v341 = vmul.f32 %v338, %v279
        %v342 = vmul.f32 %v338, %v281
        %v343 = vmul.f32 %v338, %v283
        %v344 = vmul.f32 %v338, %v285
        %v345 = vmul.f32 %v338, %v287
        %v346 = vmul.f32 %v338, %v289
        %v347 = vmul.f32 %v338, %v291
        %v348 = vmul.f32 %v338, %v293
        %v349 = vmul.f32 %v338, %v295
        %v350 = vmul.f32 %v338, %v297
        %v351 = vmul.f32 %v338, %v299
        %v352 = vmul.f32 %v338, %v301
        %v353 = vmul.f32 %v338, %v303
        %v354 = vmul.f32 %v338, %v305
        %v355 = vmul.f32 %v338, %v307
        %v356 = vmul.f32 %v338, %v309
        %v357 = vmul.f32 %v338, %v311
        %v358 = vmul.f32 %v338, %v313
        %v359 = vmul.f32 %v338, %v315
        %v360 = vmul.f32 %v338, %v317
        %v361 = vmul.f32 %v338, %v319
        %v362 = vmul.f32 %v338, %v321
        %v363 = vmul.f32 %v338, %v323
        %v364 = vmul.f32 %v338, %v325
        %v365 = vmul.f32 %v338, %v327
        %v366 = vmul.f32 %v338, %v329
        %v367 = vmul.f32 %v338, %v331
        %v368 = vmul.f32 %v338, %v333
        %v369 = vmul.f32 %v338, %v335
        %v370 = vmul.f32 %v338, %v337
        %v371 = vmul.f32 %v339, 1.442695
        %v372 = vpow.pop %v371
        %v373 = vmul.f32 %v340, 1.442695
        %v374 = vpow.pop %v373
        %v375 = vmul.f32 %v341, 1.442695
        %v376 = vpow.pop %v375
        %v377 = vmul.f32 %v342, 1.442695
        %v378 = vpow.pop %v377
        %v379 = vmul.f32 %v343, 1.442695
        %v380 = vpow.pop %v379
        %v381 = vmul.f32 %v344, 1.442695
        %v382 = vpow.pop %v381
        %v383 = vmul.f32 %v345, 1.442695
        %v384 = vpow.pop %v383
        %v385 = vmul.f32 %v346, 1.442695
        %v386 = vpow.pop %v385
        %v387 = vmul.f32 %v347, 1.442695
        %v388 = vpow.pop %v387
        %v389 = vmul.f32 %v348, 1.442695
        %v390 = vpow.pop %v389
        %v391 = vmul.f32 %v349, 1.442695
        %v392 = vpow.pop %v391
        %v393 = vmul.f32 %v350, 1.442695
        %v394 = vpow.pop %v393
        %v395 = vmul.f32 %v351, 1.442695
        %v396 = vpow.pop %v395
        %v397 = vmul.f32 %v352, 1.442695
        %v398 = vpow.pop %v397
        %v399 = vmul.f32 %v353, 1.442695
        %v400 = vpow.pop %v399
        %v401 = vmul.f32 %v354, 1.442695
        %v402 = vpow.pop %v401
        %v403 = vmul.f32 %v355, 1.442695
        %v404 = vpow.pop %v403
        %v405 = vmul.f32 %v356, 1.442695
        %v406 = vpow.pop %v405
        %v407 = vmul.f32 %v357, 1.442695
        %v408 = vpow.pop %v407
        %v409 = vmul.f32 %v358, 1.442695
        %v410 = vpow.pop %v409
        %v411 = vmul.f32 %v359, 1.442695
        %v412 = vpow.pop %v411
        %v413 = vmul.f32 %v360, 1.442695
        %v414 = vpow.pop %v413
        %v415 = vmul.f32 %v361, 1.442695
        %v416 = vpow.pop %v415
        %v417 = vmul.f32 %v362, 1.442695
        %v418 = vpow.pop %v417
        %v419 = vmul.f32 %v363, 1.442695
        %v420 = vpow.pop %v419
        %v421 = vmul.f32 %v364, 1.442695
        %v422 = vpow.pop %v421
        %v423 = vmul.f32 %v365, 1.442695
        %v424 = vpow.pop %v423
        %v425 = vmul.f32 %v366, 1.442695
        %v426 = vpow.pop %v425
        %v427 = vmul.f32 %v367, 1.442695
        %v428 = vpow.pop %v427
        %v429 = vmul.f32 %v368, 1.442695
        %v430 = vpow.pop %v429
        %v431 = vmul.f32 %v369, 1.442695
        %v432 = vpow.pop %v431
        %v433 = vmul.f32 %v370, 1.442695
        %v434 = vpow.pop %v433
        %vm435 = vcmask 31744
        %v436 = vsel %vm435, %v372, 0.0
        %v437 = vsel %vm435, %v374, 0.0
        %v438 = vadd.f32 %v436, %v437
        %v439 = vsel %vm435, %v376, 0.0
        %v440 = vadd.f32 %v438, %v439
        %v441 = vsel %vm435, %v378, 0.0
        %v442 = vadd.f32 %v440, %v441
        %v443 = vsel %vm435, %v380, 0.0
        %v444 = vadd.f32 %v442, %v443
        %v445 = vsel %vm435, %v382, 0.0
        %v446 = vadd.f32 %v444, %v445
        %v447 = vsel %vm435, %v384, 0.0
        %v448 = vadd.f32 %v446, %v447
        %v449 = vsel %vm435, %v386, 0.0
        %v450 = vadd.f32 %v448, %v449
        %v451 = vsel %vm435, %v388, 0.0
        %v452 = vadd.f32 %v450, %v451
        %v453 = vsel %vm435, %v390, 0.0
        %v454 = vadd.f32 %v452, %v453
        %v455 = vsel %vm435, %v392, 0.0
        %v456 = vadd.f32 %v454, %v455
        %v457 = vsel %vm435, %v394, 0.0
        %v458 = vadd.f32 %v456, %v457
        %v459 = vsel %vm435, %v396, 0.0
        %v460 = vadd.f32 %v458, %v459
        %v461 = vsel %vm435, %v398, 0.0
        %v462 = vadd.f32 %v460, %v461
        %v463 = vsel %vm435, %v400, 0.0
        %v464 = vadd.f32 %v462, %v463
        %v465 = vsel %vm435, %v402, 0.0
        %v466 = vadd.f32 %v464, %v465
        %v467 = vsel %vm435, %v404, 0.0
        %v468 = vadd.f32 %v466, %v467
        %v469 = vsel %vm435, %v406, 0.0
        %v470 = vadd.f32 %v468, %v469
        %v471 = vsel %vm435, %v408, 0.0
        %v472 = vadd.f32 %v470, %v471
        %v473 = vsel %vm435, %v410, 0.0
        %v474 = vadd.f32 %v472, %v473
        %v475 = vsel %vm435, %v412, 0.0
        %v476 = vadd.f32 %v474, %v475
        %v477 = vsel %vm435, %v414, 0.0
        %v478 = vadd.f32 %v476, %v477
        %v479 = vsel %vm435, %v416, 0.0
        %v480 = vadd.f32 %v478, %v479
        %v481 = vsel %vm435, %v418, 0.0
        %v482 = vadd.f32 %v480, %v481
        %v483 = vsel %vm435, %v420, 0.0
        %v484 = vadd.f32 %v482, %v483
        %v485 = vsel %vm435, %v422, 0.0
        %v486 = vadd.f32 %v484, %v485
        %v487 = vsel %vm435, %v424, 0.0
        %v488 = vadd.f32 %v486, %v487
        %v489 = vsel %vm435, %v426, 0.0
        %v490 = vadd.f32 %v488, %v489
        %v491 = vsel %vm435, %v428, 0.0
        %v492 = vadd.f32 %v490, %v491
        %v493 = vsel %vm435, %v430, 0.0
        %v494 = vadd.f32 %v492, %v493
        %v495 = vsel %vm435, %v432, 0.0
        %v496 = vadd.f32 %v494, %v495
        %v497 = vsel %vm435, %v434, 0.0
        %v498 = vadd.f32 %v496, %v497
        %v499 = vrot.slane %v498, 4
        %v500 = vadd.f32 %v498, %v499
        %v501 = vrot.slane %v500, 2
        %v502 = vadd.f32 %v500, %v501
        %v503 = vrot.slane %v502, 1
        %v504 = vadd.f32 %v502, %v503
        %v505 = vmul.f32 %v504, 0.00390625
        %v506 = vlog2.pop %v505
        %v507 = vmul.f32 %v506, 0.6931472
        %v508 = vstv %s170
        %v509 = vmul.f32 %v507, %v508
        %v510 = vmul.f32 %v509, 1.442695
        %v511 = vpow.pop %v510
        %vm512 = vcmask 24576
        %513 = vst.msk [vmem:[%s153] sm:$0x1] %vm512, %v511
        %s514 = sand.u32 %s70, 1
        %s515 = scalar_lea.sflag [#allocation6], %s514
        %s516 = sand.u32 %s70, 1
        %s517 = scalar_lea.vmem [#allocation7], %s516
        // Predicated region
        $region29: #{tpu_custom_call.1} parent=23 // pred_check
          %p518 = pneg %p80
        $region30: #{tpu_custom_call.1} parent=23 // pred_check_branch
          %520 = sbr.rel (%p518) target = $region32
        $region31: #{tpu_custom_call.1} parent=23 // pred_region
          %522 = vsyncadd %s515, 0
          %s523 = sadd.s32 %s25, %s24
          %s524 = scalar_lea.hbm %s2, %s523
          %s526 = sshll.u32 %s517, 4
          %s527 = int_to_ptr.vmem [resolvable:$true] %s526
          %s528 = sshll.u32 %s524, 4
          %s529 = int_to_ptr.hbm [resolvable:$true] %s528
          %531 = dma.vmem_to_hbm [thread:$0]  %s527, 16, %s529, %s515
        $region32: #{tpu_custom_call.1} parent=23 // pred_fallthru
          _
      $region24: #{tpu_custom_call.1} parent=5 // pred_fallthru
        _
      %p532 = scmp.le.s32.totalorder 2, %s15
      // Predicated region
      $region33: #{tpu_custom_call.1} parent=5 // pred_check
        %p533 = pneg %p532
      $region34: #{tpu_custom_call.1} parent=5 // pred_check_branch
        %535 = sbr.rel (%p533) target = $region36
      $region35: #{tpu_custom_call.1} parent=5 // pred_region
        %s536 = ssub.s32 %s15, 2
        // Predicated region
        $region37: #{tpu_custom_call.1} parent=35 // pred_check
          %p537 = pneg %p86
        $region38: #{tpu_custom_call.1} parent=35 // pred_check_branch
          %539 = sbr.rel (%p537) target = $region40
        $region39: #{tpu_custom_call.1} parent=35 // pred_region
          %s540 = sand.u32 %s71, 1
          %s541 = scalar_lea.sflag [#allocation6], %s540
          %s542 = sand.u32 %s71, 1
          %s543 = scalar_lea.vmem [#allocation7], %s542
          %545 = dma.done %s541, 16
        $region40: #{tpu_custom_call.1} parent=35 // pred_fallthru
          _
      $region36: #{tpu_custom_call.1} parent=5 // pred_fallthru
        _
    $region6: #{tpu_custom_call.1} parent=1 // loop_footer
      %s19 = sadd.s32 1, %s15
    $region7: #{tpu_custom_call.1} parent=1 // loop_footer_branch
      %14 = sbr.rel target = $region3
    $region8: #{tpu_custom_call.1} parent=1 // loop_exit
      _
    %546 = vsyncpa [#allocation5], 1
    %s547 = scalar_lea.sflag [#allocation5], 1
    %548 = vsyncpa %s547, 1
    %549 = vsyncpa [#allocation6], 1
    %s550 = scalar_lea.sflag [#allocation6], 1
    %551 = vsyncpa %s550, 1

</llo_original>
